<compile_context>
chip_gen: v7x
topology: tpu7x:2x2x1
jax: 0.10.0
libtpu: 0.0.40
codegen_flags: <defaults>
</compile_context>

<pallas_src>
import jax
import jax.numpy as jnp
from jax.experimental import pallas as pl
from jax.experimental.pallas import tpu as pltpu

D_IN = 48 * 4 * 4   # 768 = fc1 input features
HID = 100           # fc1 / fc2 output features
NCLS = 10           # classifier outputs
HID_PAD = 128       # lane-padded hidden width
CLS_PAD = 128       # lane-padded output width
BN_EPS = 1e-5


# ---------------------------------------------------------------------------
# Kernel: fused 3-layer MLP (fc1+BN1+relu -> fc2+BN2+relu -> fc3_mu+bias)
# ---------------------------------------------------------------------------
def predictor_kernel(x_ref, w1_ref, t1_ref, w2_ref, t2_ref, w3_ref, b3_ref,
                     out_ref):
    # fc1 (BN1 scale pre-folded into W1) -> shift -> relu   (f32 epilogue)
    h1 = jnp.dot(x_ref[...], w1_ref[...], preferred_element_type=jnp.float32)
    h1 = jnp.maximum(h1 + t1_ref[...], 0.0)
    # fc2 (BN2 scale pre-folded into W2) -> shift -> relu
    h2 = jnp.dot(h1.astype(jnp.bfloat16), w2_ref[...],
                 preferred_element_type=jnp.float32)
    h2 = jnp.maximum(h2 + t2_ref[...], 0.0)
    # fc3 (mu classifier): out = h2 @ fc3_mu.T + fc3_bias
    out = jnp.dot(h2.astype(jnp.bfloat16), w3_ref[...],
                  preferred_element_type=jnp.float32)
    out_ref[...] = out + b3_ref[...]


# ---------------------------------------------------------------------------
# One-time parameter preparation (OUT of the per-call hot path)
# ---------------------------------------------------------------------------
def _pad2(a, shape, dtype):
    out = jnp.zeros(shape, dtype)
    return out.at[: a.shape[0], : a.shape[1]].set(a.astype(dtype))


def _pad_row(a, width):
    out = jnp.zeros((1, width), jnp.float32)
    return out.at[0, : a.shape[0]].set(a.astype(jnp.float32))


def prepare_params(params):
    """Fold eval-mode BN into weights/shifts, transpose, pad, cast to bf16.

    Call once; pass the result to predictor_forward.
    Padded weight columns and shift lanes are zero, so padded hidden features
    stay exactly 0 through ReLU (invariant required for correctness).
    """
    (w1, b1, g1, be1, m1, v1,
     w2, b2, g2, be2, m2, v2,
     mu3, b3) = params

    scale1 = g1 / jnp.sqrt(v1 + BN_EPS)
    shift1 = b1 * scale1 + be1 - m1 * scale1
    scale2 = g2 / jnp.sqrt(v2 + BN_EPS)
    shift2 = b2 * scale2 + be2 - m2 * scale2

    # BN scale folded directly into the weight columns.
    w1f = w1.T * scale1[None, :]              # (768, 100)
    w2f = w2.T * scale2[None, :]              # (100, 100)

    W1 = _pad2(w1f, (D_IN, HID_PAD), jnp.bfloat16)      # (768, 128) bf16
    W2 = _pad2(w2f, (HID_PAD, HID_PAD), jnp.bfloat16)   # (128, 128) bf16
    W3 = _pad2(mu3.T, (HID_PAD, CLS_PAD), jnp.bfloat16)  # (128, 128) bf16
    T1 = _pad_row(shift1, HID_PAD)                       # (1, 128) f32
    T2 = _pad_row(shift2, HID_PAD)                       # (1, 128) f32
    B3 = _pad_row(b3, CLS_PAD)                           # (1, 128) f32

    return tuple(jax.device_put(t) for t in (W1, T1, W2, T2, W3, B3))


# ---------------------------------------------------------------------------
# Forward wrapper
# ---------------------------------------------------------------------------
def _round_up(x, m):
    return ((x + m - 1) // m) * m


def _choose_tile_m(batch):
    if batch >= 256:
        return 256          # MXU-native M on v6e/v7x; fine (2x128) on v5e
    if batch >= 128:
        return 128
    return _round_up(batch, 8)   # tiny batches: single small tile


@jax.jit
def predictor_forward(x, prepared):
    """Eval-mode forward (dropout = identity, BN uses running stats, only_mu).

    Returns a list with one (B, 10) array, matching the PyTorch module.
    """
    # TODO(synk): training-mode branches (dropout masks + fc3 rsample ensemble)
    # are stochastic and not reproduced here; only the eval/only_mu path is.
    W1, T1, W2, T2, W3, B3 = prepared

    B = x.shape[0]
    tile_m = _choose_tile_m(B)
    b_pad = _round_up(B, tile_m)
    xp = jnp.zeros((b_pad, D_IN), jnp.bfloat16).at[:B].set(
        x.astype(jnp.bfloat16))

    flops = 2 * b_pad * (D_IN * HID_PAD + HID_PAD * HID_PAD + HID_PAD * CLS_PAD)
    bytes_accessed = (xp.size * 2
                      + (W1.size + W2.size + W3.size) * 2
                      + (T1.size + T2.size + B3.size) * 4
                      + b_pad * CLS_PAD * 4)

    out_padded = pl.pallas_call(
        predictor_kernel,
        out_shape=jax.ShapeDtypeStruct((b_pad, CLS_PAD), jnp.float32),
        grid=(b_pad // tile_m,),
        in_specs=[
            pl.BlockSpec((tile_m, D_IN), lambda i: (i, 0)),      # x tile
            pl.BlockSpec((D_IN, HID_PAD), lambda i: (0, 0)),     # W1 (resident)
            pl.BlockSpec((1, HID_PAD), lambda i: (0, 0)),        # shift1
            pl.BlockSpec((HID_PAD, HID_PAD), lambda i: (0, 0)),  # W2 (resident)
            pl.BlockSpec((1, HID_PAD), lambda i: (0, 0)),        # shift2
            pl.BlockSpec((HID_PAD, CLS_PAD), lambda i: (0, 0)),  # W3 (resident)
            pl.BlockSpec((1, CLS_PAD), lambda i: (0, 0)),        # fc3 bias
        ],
        out_specs=pl.BlockSpec((tile_m, CLS_PAD), lambda i: (i, 0)),
        compiler_params=pltpu.CompilerParams(
            dimension_semantics=("parallel",)),
        cost_estimate=pl.CostEstimate(
            flops=flops, transcendentals=0, bytes_accessed=bytes_accessed),
    )(xp, W1, T1, W2, T2, W3, B3)

    return [out_padded[:B, :NCLS]]


# ---------------------------------------------------------------------------
# References & synthetic params
# ---------------------------------------------------------------------------
def init_params(key):
    """Deterministic synthetic parameters matching the PyTorch __init__ shapes."""
    ks = jax.random.split(key, 6)
    # fc1: Linear(768, 100)
    w1 = jax.random.uniform(ks[0], (HID, D_IN), jnp.float32, -0.05, 0.05)
    b1 = jax.random.uniform(ks[1], (HID,), jnp.float32, -0.05, 0.05)
    # bn1_fc: BatchNorm1d(100)  (gamma, beta, running_mean, running_var)
    g1 = jnp.ones((HID,), jnp.float32) + 0.1 * jax.random.normal(ks[2], (HID,))
    be1 = 0.1 * jax.random.normal(ks[3], (HID,))
    m1 = 0.1 * jax.random.normal(ks[4], (HID,))
    v1 = jnp.ones((HID,), jnp.float32) + 0.05 * jax.random.uniform(ks[5], (HID,))

    ks = jax.random.split(jax.random.fold_in(key, 1), 6)
    # fc2: Linear(100, 100)
    w2 = jax.random.uniform(ks[0], (HID, HID), jnp.float32, -0.1, 0.1)
    b2 = jax.random.uniform(ks[1], (HID,), jnp.float32, -0.1, 0.1)
    # bn2_fc: BatchNorm1d(100)
    g2 = jnp.ones((HID,), jnp.float32) + 0.1 * jax.random.normal(ks[2], (HID,))
    be2 = 0.1 * jax.random.normal(ks[3], (HID,))
    m2 = 0.1 * jax.random.normal(ks[4], (HID,))
    v2 = jnp.ones((HID,), jnp.float32) + 0.05 * jax.random.uniform(ks[5], (HID,))

    # fc3_mu ~ randn(10, 100); fc3_bias = zeros(10)
    mu3 = jax.random.normal(jax.random.fold_in(key, 2), (NCLS, HID), jnp.float32)
    b3 = jnp.zeros((NCLS,), jnp.float32)

    return (w1, b1, g1, be1, m1, v1, w2, b2, g2, be2, m2, v2, mu3, b3)


def reference_forward(x, params):
    """Pure-f32 reference matching the PyTorch eval / only_mu forward."""
    (w1, b1, g1, be1, m1, v1,
     w2, b2, g2, be2, m2, v2,
     mu3, b3) = params
    h = x @ w1.T + b1
    h = (h - m1) / jnp.sqrt(v1 + BN_EPS) * g1 + be1
    h = jnp.maximum(h, 0.0)
    h = h @ w2.T + b2
    h = (h - m2) / jnp.sqrt(v2 + BN_EPS) * g2 + be2
    h = jnp.maximum(h, 0.0)
    return h @ mu3.T + b3


def prepared_reference(x, prepared):
    """Plain-JAX version of exactly what the kernel computes (same bf16 casts)."""
    W1, T1, W2, T2, W3, B3 = prepared
    xb = x.astype(jnp.bfloat16)
    h1 = jnp.maximum(
        jnp.dot(xb, W1, preferred_element_type=jnp.float32) + T1, 0.0)
    h2 = jnp.maximum(
        jnp.dot(h1.astype(jnp.bfloat16), W2,
                preferred_element_type=jnp.float32) + T2, 0.0)
    out = jnp.dot(h2.astype(jnp.bfloat16), W3,
                  preferred_element_type=jnp.float32) + B3
    return out[:, :NCLS]


if __name__ == "__main__":
    key = jax.random.PRNGKey(0)
    params = init_params(jax.random.fold_in(key, 7))
    prepared = prepare_params(params)          # one-time prep, off the hot path
    x = jax.random.normal(key, (2, D_IN), jnp.float32)  # batch=2, features=768

    outs = predictor_forward(x, prepared)
    out = jax.block_until_ready(outs[0])
    assert out.shape == (2, NCLS)

    # Tight check: kernel matches the same bf16-input math done in plain JAX.
    ref_tight = prepared_reference(x, prepared)
    err_tight = jnp.max(jnp.abs(out - ref_tight))
    assert jnp.allclose(out, ref_tight, atol=5e-3, rtol=5e-3), (
        f"kernel vs bf16 reference max err {err_tight}")

    # Semantics check vs the pure-f32 PyTorch-equivalent forward (bf16 weights
    # relax the tolerance on the logits).
    ref_f32 = reference_forward(x, params)
    err_f32 = jnp.max(jnp.abs(out - ref_f32))
    assert jnp.allclose(out, ref_f32, atol=2e-1, rtol=5e-2), (
        f"kernel vs f32 reference max err {err_f32}")

    print("KERNEL_OK")
</pallas_src>

<mosaic_0001>
module attributes {stable_mosaic.version = 11 : i64} {
  func.func @predictor_kernel(%arg0: i32, %arg1: memref<8x768xbf16, #tpu.memory_space<vmem>>, %arg2: memref<768x128xbf16, #tpu.memory_space<vmem>>, %arg3: memref<1x128xf32, #tpu.memory_space<vmem>>, %arg4: memref<128x128xbf16, #tpu.memory_space<vmem>>, %arg5: memref<1x128xf32, #tpu.memory_space<vmem>>, %arg6: memref<128x128xbf16, #tpu.memory_space<vmem>>, %arg7: memref<1x128xf32, #tpu.memory_space<vmem>>, %arg8: memref<8x128xf32, #tpu.memory_space<vmem>>) attributes {dimension_semantics = [#tpu.dimension_semantics<parallel>], iteration_bounds = array<i64: 1>, scalar_prefetch = 0 : i64, scratch_operands = 0 : i64, tpu.core_type = #tpu.core_type<tc>, window_params = [{transform_indices = @transform_0, window_bounds = array<i64: 8, 768>}, {pipeline_mode = #tpu.pipeline_mode<synchronous>, transform_indices = @transform_1, window_bounds = array<i64: 768, 128>}, {pipeline_mode = #tpu.pipeline_mode<synchronous>, transform_indices = @transform_2, window_bounds = array<i64: 1, 128>}, {pipeline_mode = #tpu.pipeline_mode<synchronous>, transform_indices = @transform_3, window_bounds = array<i64: 128, 128>}, {pipeline_mode = #tpu.pipeline_mode<synchronous>, transform_indices = @transform_4, window_bounds = array<i64: 1, 128>}, {pipeline_mode = #tpu.pipeline_mode<synchronous>, transform_indices = @transform_5, window_bounds = array<i64: 128, 128>}, {pipeline_mode = #tpu.pipeline_mode<synchronous>, transform_indices = @transform_6, window_bounds = array<i64: 1, 128>}, {transform_indices = @transform_7, window_bounds = array<i64: 8, 128>}]} {
    %c0 = arith.constant 0 : index
    %c0_0 = arith.constant 0 : index
    %0 = vector.load %arg1[%c0, %c0_0] : memref<8x768xbf16, #tpu.memory_space<vmem>>, vector<8x768xbf16>
    %c0_1 = arith.constant 0 : index
    %c0_2 = arith.constant 0 : index
    %1 = vector.load %arg2[%c0_1, %c0_2] : memref<768x128xbf16, #tpu.memory_space<vmem>>, vector<768x128xbf16>
    %cst = arith.constant dense<0.000000e+00> : vector<8x128xf32>
    %2 = tpu.matmul %0, %1, %cst {dimension_numbers = #tpu.dot_dimension_numbers<[1], [0], [0], [1], [0, 0, 1, 1], [], []>} : vector<8x768xbf16>, vector<768x128xbf16>, vector<8x128xf32> -> vector<8x128xf32>
    %c0_3 = arith.constant 0 : index
    %c0_4 = arith.constant 0 : index
    %3 = vector.load %arg3[%c0_3, %c0_4] : memref<1x128xf32, #tpu.memory_space<vmem>>, vector<1x128xf32>
    %4 = vector.broadcast %3 : vector<1x128xf32> to vector<8x128xf32>
    %5 = arith.addf %2, %4 : vector<8x128xf32>
    %cst_5 = arith.constant 0.000000e+00 : f32
    %6 = vector.broadcast %cst_5 : f32 to vector<8x128xf32>
    %7 = arith.maximumf %5, %6 : vector<8x128xf32>
    %8 = arith.truncf %7 : vector<8x128xf32> to vector<8x128xbf16>
    %c0_6 = arith.constant 0 : index
    %c0_7 = arith.constant 0 : index
    %9 = vector.load %arg4[%c0_6, %c0_7] : memref<128x128xbf16, #tpu.memory_space<vmem>>, vector<128x128xbf16>
    %cst_8 = arith.constant dense<0.000000e+00> : vector<8x128xf32>
    %10 = tpu.matmul %8, %9, %cst_8 {dimension_numbers = #tpu.dot_dimension_numbers<[1], [0], [0], [1], [0, 0, 1, 1], [], []>} : vector<8x128xbf16>, vector<128x128xbf16>, vector<8x128xf32> -> vector<8x128xf32>
    %c0_9 = arith.constant 0 : index
    %c0_10 = arith.constant 0 : index
    %11 = vector.load %arg5[%c0_9, %c0_10] : memref<1x128xf32, #tpu.memory_space<vmem>>, vector<1x128xf32>
    %12 = vector.broadcast %11 : vector<1x128xf32> to vector<8x128xf32>
    %13 = arith.addf %10, %12 : vector<8x128xf32>
    %cst_11 = arith.constant 0.000000e+00 : f32
    %14 = vector.broadcast %cst_11 : f32 to vector<8x128xf32>
    %15 = arith.maximumf %13, %14 : vector<8x128xf32>
    %16 = arith.truncf %15 : vector<8x128xf32> to vector<8x128xbf16>
    %c0_12 = arith.constant 0 : index
    %c0_13 = arith.constant 0 : index
    %17 = vector.load %arg6[%c0_12, %c0_13] : memref<128x128xbf16, #tpu.memory_space<vmem>>, vector<128x128xbf16>
    %cst_14 = arith.constant dense<0.000000e+00> : vector<8x128xf32>
    %18 = tpu.matmul %16, %17, %cst_14 {dimension_numbers = #tpu.dot_dimension_numbers<[1], [0], [0], [1], [0, 0, 1, 1], [], []>} : vector<8x128xbf16>, vector<128x128xbf16>, vector<8x128xf32> -> vector<8x128xf32>
    %c0_15 = arith.constant 0 : index
    %c0_16 = arith.constant 0 : index
    %19 = vector.load %arg7[%c0_15, %c0_16] : memref<1x128xf32, #tpu.memory_space<vmem>>, vector<1x128xf32>
    %20 = vector.broadcast %19 : vector<1x128xf32> to vector<8x128xf32>
    %21 = arith.addf %18, %20 : vector<8x128xf32>
    %c0_17 = arith.constant 0 : index
    %c0_18 = arith.constant 0 : index
    %22 = vector.load %arg8[%c0_17, %c0_18] : memref<8x128xf32, #tpu.memory_space<vmem>>, vector<8x128xf32>
    tpu.vector_store %arg8[%c0_17, %c0_18], %21 {strides = array<i32>} : memref<8x128xf32, #tpu.memory_space<vmem>>, vector<8x128xf32>,
    return
  }
  func.func @transform_0(%arg0: i32) -> (i32, i32) {
    %c0_i32 = arith.constant 0 : i32
    %c0_i32_0 = arith.constant 0 : i32
    return %arg0, %c0_i32 : i32, i32
  }
  func.func @transform_1(%arg0: i32) -> (i32, i32) {
    %c0_i32 = arith.constant 0 : i32
    %c0_i32_0 = arith.constant 0 : i32
    %c0_i32_1 = arith.constant 0 : i32
    return %c0_i32, %c0_i32_0 : i32, i32
  }
  func.func @transform_2(%arg0: i32) -> (i32, i32) {
    %c0_i32 = arith.constant 0 : i32
    %c0_i32_0 = arith.constant 0 : i32
    %c0_i32_1 = arith.constant 0 : i32
    return %c0_i32, %c0_i32_0 : i32, i32
  }
  func.func @transform_3(%arg0: i32) -> (i32, i32) {
    %c0_i32 = arith.constant 0 : i32
    %c0_i32_0 = arith.constant 0 : i32
    %c0_i32_1 = arith.constant 0 : i32
    return %c0_i32, %c0_i32_0 : i32, i32
  }
  func.func @transform_4(%arg0: i32) -> (i32, i32) {
    %c0_i32 = arith.constant 0 : i32
    %c0_i32_0 = arith.constant 0 : i32
    %c0_i32_1 = arith.constant 0 : i32
    return %c0_i32, %c0_i32_0 : i32, i32
  }
  func.func @transform_5(%arg0: i32) -> (i32, i32) {
    %c0_i32 = arith.constant 0 : i32
    %c0_i32_0 = arith.constant 0 : i32
    %c0_i32_1 = arith.constant 0 : i32
    return %c0_i32, %c0_i32_0 : i32, i32
  }
  func.func @transform_6(%arg0: i32) -> (i32, i32) {
    %c0_i32 = arith.constant 0 : i32
    %c0_i32_0 = arith.constant 0 : i32
    %c0_i32_1 = arith.constant 0 : i32
    return %c0_i32, %c0_i32_0 : i32, i32
  }
  func.func @transform_7(%arg0: i32) -> (i32, i32) {
    %c0_i32 = arith.constant 0 : i32
    %c0_i32_0 = arith.constant 0 : i32
    return %arg0, %c0_i32 : i32, i32
  }
}

</mosaic_0001>

<llo_original>
// kernel: predictor_forward.1
$region0: #{predictor_forward.1}
  #allocation0 [shape = 'u32[]', space=smem, size = 0x4, offset = 0x4, fixed_abs, tag = 'smem constant byte address 0x4 - core index']
  #allocation1 [shape = 'u32[144,128]{1,0:T(1,128)}', space=vmem, size = 0x12000, scoped, tag = 'internal scratch']
  %s0 = inlined_call_operand.vmem [shape: bf16[8,768], index: 0, kind: input, shape index: {}]
  %s1 = inlined_call_operand.hbm [shape: bf16[768,128], index: 1, kind: input, shape index: {}]
  %s2 = inlined_call_operand.vmem [shape: f32[1,128], index: 2, kind: input, shape index: {}]
  %s3 = inlined_call_operand.hbm [shape: bf16[128,128], index: 3, kind: input, shape index: {}]
  %s4 = inlined_call_operand.vmem [shape: f32[1,128], index: 4, kind: input, shape index: {}]
  %s5 = inlined_call_operand.vmem [shape: bf16[128,128], index: 5, kind: input, shape index: {}]
  %s6 = inlined_call_operand.vmem [shape: f32[1,128], index: 6, kind: input, shape index: {}]
  %s7 = inlined_call_operand.vmem [shape: f32[8,128], index: 7, kind: output, shape index: {}]
  %s8 = sld [smem:[#allocation0]]
  $region46: #{predictor_forward.1} parent=0
    _
  %s10 = ssub.s32 1, %s8
  %s11 = scalar_select 0, %s10, %s8
  $region1: #{predictor_forward.1} parent=0
    #allocation2 [shape = 'u8[196608]{0}', space=vmem, size = 0x30000, scoped, tag = 'input window, operand 1, single buffered']
    #allocation3 [shape = 's32[1]{0}', space=sflag, size = 0x4, scoped, tag = 'scoped memory for predictor_forward.1']
    #allocation4 [shape = 'u8[32768]{0}', space=vmem, size = 0x8000, scoped, tag = 'input window, operand 3, single buffered']
    #allocation5 [shape = 's32[1]{0}', space=sflag, size = 0x4, scoped, tag = 'scoped memory for predictor_forward.1']
    %12 = vsyncpa [#allocation3], 0
    %13 = vsyncpa [#allocation5], 0
    // Predicated region
    $region2: #{predictor_forward.1} parent=1 // pred_check
      _
    $region3: #{predictor_forward.1} parent=1 // pred_check_branch
      %15 = sbr.rel (0) target = $region5
    $region4: #{predictor_forward.1} parent=1 // pred_region
      _
    $region5: #{predictor_forward.1} parent=1 // pred_fallthru
      _
    // Predicated region
    $region6: #{predictor_forward.1} parent=1 // pred_check
      _
    $region7: #{predictor_forward.1} parent=1 // pred_check_branch
      %17 = sbr.rel (0) target = $region9
    $region8: #{predictor_forward.1} parent=1 // pred_region
      %s19 = ssub.s32 6144, 6144
      %20 = vsyncadd [#allocation3], %s19
      %s21 = sshll.u32 [#allocation2], 4
      %s22 = int_to_ptr.vmem [resolvable:$true] %s21
      %27 = dma.hbm_to_vmem [thread:$0]  %s1, 6144, %s22, [#allocation3], 64, 64, 4
    $region9: #{predictor_forward.1} parent=1 // pred_fallthru
      _
    // Predicated region
    $region10: #{predictor_forward.1} parent=1 // pred_check
      _
    $region11: #{predictor_forward.1} parent=1 // pred_check_branch
      %29 = sbr.rel (0) target = $region13
    $region12: #{predictor_forward.1} parent=1 // pred_region
      _
    $region13: #{predictor_forward.1} parent=1 // pred_fallthru
      _
    // Predicated region
    $region14: #{predictor_forward.1} parent=1 // pred_check
      _
    $region15: #{predictor_forward.1} parent=1 // pred_check_branch
      %31 = sbr.rel (0) target = $region17
    $region16: #{predictor_forward.1} parent=1 // pred_region
      %s33 = ssub.s32 1024, 1024
      %34 = vsyncadd [#allocation5], %s33
      %s35 = sshll.u32 [#allocation4], 4
      %s36 = int_to_ptr.vmem [resolvable:$true] %s35
      %41 = dma.hbm_to_vmem [thread:$0]  %s3, 1024, %s36, [#allocation5], 64, 64, 4
    $region17: #{predictor_forward.1} parent=1 // pred_fallthru
      _
    // Predicated region
    $region18: #{predictor_forward.1} parent=1 // pred_check
      _
    $region19: #{predictor_forward.1} parent=1 // pred_check_branch
      %43 = sbr.rel (0) target = $region21
    $region20: #{predictor_forward.1} parent=1 // pred_region
      _
    $region21: #{predictor_forward.1} parent=1 // pred_fallthru
      _
    // Predicated region
    $region22: #{predictor_forward.1} parent=1 // pred_check
      _
    $region23: #{predictor_forward.1} parent=1 // pred_check_branch
      %45 = sbr.rel (0) target = $region25
    $region24: #{predictor_forward.1} parent=1 // pred_region
      _
    $region25: #{predictor_forward.1} parent=1 // pred_fallthru
      _
    // Predicated region
    $region26: #{predictor_forward.1} parent=1 // pred_check
      _
    $region27: #{predictor_forward.1} parent=1 // pred_check_branch
      %47 = sbr.rel (0) target = $region29
    $region28: #{predictor_forward.1} parent=1 // pred_region
      _
    $region29: #{predictor_forward.1} parent=1 // pred_fallthru
      _
    // Predicated region
    $region30: #{predictor_forward.1} parent=1 // pred_check
      _
    $region31: #{predictor_forward.1} parent=1 // pred_check_branch
      %49 = sbr.rel (0) target = $region33
    $region32: #{predictor_forward.1} parent=1 // pred_region
      %50 = dma.done [#allocation3], 6144
    $region33: #{predictor_forward.1} parent=1 // pred_fallthru
      _
    // Predicated region
    $region34: #{predictor_forward.1} parent=1 // pred_check
      _
    $region35: #{predictor_forward.1} parent=1 // pred_check_branch
      %52 = sbr.rel (0) target = $region37
    $region36: #{predictor_forward.1} parent=1 // pred_region
      %53 = dma.done [#allocation5], 1024
    $region37: #{predictor_forward.1} parent=1 // pred_fallthru
      _
    %v55 = vld [vmem:[%s0] sm:$0xff]
    %v56 = vld [vmem:[%s0 + $0x8] sm:$0xff]
    %v57 = vld [vmem:[%s0 + $0x10] sm:$0xff]
    %v58 = vld [vmem:[#allocation2] sm:$0xf]
    %v59 = vld [vmem:[#allocation2 + $0x4] sm:$0xf]
    %v60 = vld [vmem:[#allocation2 + $0x8] sm:$0xf]
    %v61 = vld [vmem:[#allocation2 + $0xc] sm:$0xf]
    %v62 = vld [vmem:[#allocation2 + $0x10] sm:$0xf]
    %v63 = vld [vmem:[#allocation2 + $0x14] sm:$0xf]
    %v64 = vld [vmem:[#allocation2 + $0x18] sm:$0xf]
    %v65 = vld [vmem:[#allocation2 + $0x1c] sm:$0xf]
    %v66 = vld [vmem:[#allocation2 + $0x20] sm:$0xf]
    %v67 = vld [vmem:[#allocation2 + $0x24] sm:$0xf]
    %v68 = vld [vmem:[#allocation2 + $0x28] sm:$0xf]
    %v69 = vld [vmem:[#allocation2 + $0x2c] sm:$0xf]
    %v70 = vld [vmem:[#allocation2 + $0x30] sm:$0xf]
    %v71 = vld [vmem:[#allocation2 + $0x34] sm:$0xf]
    %v72 = vld [vmem:[#allocation2 + $0x38] sm:$0xf]
    %v73 = vld [vmem:[#allocation2 + $0x3c] sm:$0xf]
    %v74 = vld [vmem:[#allocation2 + $0x40] sm:$0xf]
    %v75 = vld [vmem:[#allocation2 + $0x44] sm:$0xf]
    %v76 = vld [vmem:[#allocation2 + $0x48] sm:$0xf]
    %v77 = vld [vmem:[#allocation2 + $0x4c] sm:$0xf]
    %v78 = vld [vmem:[#allocation2 + $0x50] sm:$0xf]
    %v79 = vld [vmem:[#allocation2 + $0x54] sm:$0xf]
    %v80 = vld [vmem:[#allocation2 + $0x58] sm:$0xf]
    %v81 = vld [vmem:[#allocation2 + $0x5c] sm:$0xf]
    %v82 = vld [vmem:[#allocation2 + $0x60] sm:$0xf]
    %v83 = vld [vmem:[#allocation2 + $0x64] sm:$0xf]
    %v84 = vld [vmem:[#allocation2 + $0x68] sm:$0xf]
    %v85 = vld [vmem:[#allocation2 + $0x6c] sm:$0xf]
    %v86 = vld [vmem:[#allocation2 + $0x70] sm:$0xf]
    %v87 = vld [vmem:[#allocation2 + $0x74] sm:$0xf]
    %v88 = vld [vmem:[#allocation2 + $0x78] sm:$0xf]
    %v89 = vld [vmem:[#allocation2 + $0x7c] sm:$0xf]
    %v90 = vld [vmem:[#allocation2 + $0x80] sm:$0xf]
    %v91 = vld [vmem:[#allocation2 + $0x84] sm:$0xf]
    %v92 = vld [vmem:[#allocation2 + $0x88] sm:$0xf]
    %v93 = vld [vmem:[#allocation2 + $0x8c] sm:$0xf]
    %v94 = vld [vmem:[#allocation2 + $0x90] sm:$0xf]
    %v95 = vld [vmem:[#allocation2 + $0x94] sm:$0xf]
    %v96 = vld [vmem:[#allocation2 + $0x98] sm:$0xf]
    %v97 = vld [vmem:[#allocation2 + $0x9c] sm:$0xf]
    %v98 = vld [vmem:[#allocation2 + $0xa0] sm:$0xf]
    %v99 = vld [vmem:[#allocation2 + $0xa4] sm:$0xf]
    %v100 = vld [vmem:[#allocation2 + $0xa8] sm:$0xf]
    %v101 = vld [vmem:[#allocation2 + $0xac] sm:$0xf]
    %v102 = vld [vmem:[#allocation2 + $0xb0] sm:$0xf]
    %v103 = vld [vmem:[#allocation2 + $0xb4] sm:$0xf]
    %v104 = vld [vmem:[#allocation2 + $0xb8] sm:$0xf]
    %v105 = vld [vmem:[#allocation2 + $0xbc] sm:$0xf]
    %v106 = vld [vmem:[#allocation2 + $0xc0] sm:$0xf]
    %v107 = vld [vmem:[#allocation2 + $0xc4] sm:$0xf]
    %v108 = vld [vmem:[#allocation2 + $0xc8] sm:$0xf]
    %v109 = vld [vmem:[#allocation2 + $0xcc] sm:$0xf]
    %v110 = vld [vmem:[#allocation2 + $0xd0] sm:$0xf]
    %v111 = vld [vmem:[#allocation2 + $0xd4] sm:$0xf]
    %v112 = vld [vmem:[#allocation2 + $0xd8] sm:$0xf]
    %v113 = vld [vmem:[#allocation2 + $0xdc] sm:$0xf]
    %v114 = vld [vmem:[#allocation2 + $0xe0] sm:$0xf]
    %v115 = vld [vmem:[#allocation2 + $0xe4] sm:$0xf]
    %v116 = vld [vmem:[#allocation2 + $0xe8] sm:$0xf]
    %v117 = vld [vmem:[#allocation2 + $0xec] sm:$0xf]
    %v118 = vld [vmem:[#allocation2 + $0xf0] sm:$0xf]
    %v119 = vld [vmem:[#allocation2 + $0xf4] sm:$0xf]
    %v120 = vld [vmem:[#allocation2 + $0xf8] sm:$0xf]
    %v121 = vld [vmem:[#allocation2 + $0xfc] sm:$0xf]
    %v122 = vld [vmem:[#allocation2 + $0x100] sm:$0xf]
    %v123 = vld [vmem:[#allocation2 + $0x104] sm:$0xf]
    %v124 = vld [vmem:[#allocation2 + $0x108] sm:$0xf]
    %v125 = vld [vmem:[#allocation2 + $0x10c] sm:$0xf]
    %v126 = vld [vmem:[#allocation2 + $0x110] sm:$0xf]
    %v127 = vld [vmem:[#allocation2 + $0x114] sm:$0xf]
    %v128 = vld [vmem:[#allocation2 + $0x118] sm:$0xf]
    %v129 = vld [vmem:[#allocation2 + $0x11c] sm:$0xf]
    %v130 = vld [vmem:[#allocation2 + $0x120] sm:$0xf]
    %v131 = vld [vmem:[#allocation2 + $0x124] sm:$0xf]
    %v132 = vld [vmem:[#allocation2 + $0x128] sm:$0xf]
    %v133 = vld [vmem:[#allocation2 + $0x12c] sm:$0xf]
    %v134 = vld [vmem:[#allocation2 + $0x130] sm:$0xf]
    %v135 = vld [vmem:[#allocation2 + $0x134] sm:$0xf]
    %v136 = vld [vmem:[#allocation2 + $0x138] sm:$0xf]
    %v137 = vld [vmem:[#allocation2 + $0x13c] sm:$0xf]
    %v138 = vld [vmem:[#allocation2 + $0x140] sm:$0xf]
    %v139 = vld [vmem:[#allocation2 + $0x144] sm:$0xf]
    %v140 = vld [vmem:[#allocation2 + $0x148] sm:$0xf]
    %v141 = vld [vmem:[#allocation2 + $0x14c] sm:$0xf]
    %v142 = vld [vmem:[#allocation2 + $0x150] sm:$0xf]
    %v143 = vld [vmem:[#allocation2 + $0x154] sm:$0xf]
    %v144 = vld [vmem:[#allocation2 + $0x158] sm:$0xf]
    %v145 = vld [vmem:[#allocation2 + $0x15c] sm:$0xf]
    %v146 = vld [vmem:[#allocation2 + $0x160] sm:$0xf]
    %v147 = vld [vmem:[#allocation2 + $0x164] sm:$0xf]
    %v148 = vld [vmem:[#allocation2 + $0x168] sm:$0xf]
    %v149 = vld [vmem:[#allocation2 + $0x16c] sm:$0xf]
    %v150 = vld [vmem:[#allocation2 + $0x170] sm:$0xf]
    %v151 = vld [vmem:[#allocation2 + $0x174] sm:$0xf]
    %v152 = vld [vmem:[#allocation2 + $0x178] sm:$0xf]
    %v153 = vld [vmem:[#allocation2 + $0x17c] sm:$0xf]
    %v154 = vld [vmem:[%s2] sm:$0x1]
    %v156 = vlaneseq
    %v157 = vshrl.u32 %v156, 7
    %v158 = vsub.s32 0, %v157
    %v159 = vrot.slane %v154, %v158
    %v164 = vunpack.c.l.b16 %v55
    %v165 = vunpack.c.h.b16 %v55
    %v166 = vunpack.c.l.b16 %v56
    %v167 = vunpack.c.h.b16 %v56
    %v168 = vunpack.c.l.b16 %v57
    %v169 = vunpack.c.h.b16 %v57
    %v170 = vpack.c.b16 %v164, %v164
    %v171 = vpack.c.b16 %v165, %v165
    %v172 = vpack.c.b16 %v166, %v166
    %v173 = vpack.c.b16 %v167, %v167
    %v174 = vpack.c.b16 %v168, %v168
    %v175 = vpack.c.b16 %v169, %v169
    %v278 = vunpack.c.l.b16 %v58
    %v279 = vunpack.c.l.b16 %v59
    %v280 = vunpack.c.l.b16 %v60
    %v281 = vunpack.c.l.b16 %v61
    %v282 = vunpack.c.l.b16 %v62
    %v283 = vunpack.c.l.b16 %v63
    %v284 = vunpack.c.l.b16 %v64
    %v285 = vunpack.c.l.b16 %v65
    %v286 = vunpack.c.l.b16 %v66
    %v287 = vunpack.c.l.b16 %v67
    %v288 = vunpack.c.l.b16 %v68
    %v289 = vunpack.c.l.b16 %v69
    %v290 = vunpack.c.l.b16 %v70
    %v291 = vunpack.c.l.b16 %v71
    %v292 = vunpack.c.l.b16 %v72
    %v293 = vunpack.c.l.b16 %v73
    %v294 = vunpack.c.l.b16 %v74
    %v295 = vunpack.c.l.b16 %v75
    %v296 = vunpack.c.l.b16 %v76
    %v297 = vunpack.c.l.b16 %v77
    %v298 = vunpack.c.l.b16 %v78
    %v299 = vunpack.c.l.b16 %v79
    %v300 = vunpack.c.l.b16 %v80
    %v301 = vunpack.c.l.b16 %v81
    %v302 = vunpack.c.l.b16 %v82
    %v303 = vunpack.c.l.b16 %v83
    %v304 = vunpack.c.l.b16 %v84
    %v305 = vunpack.c.l.b16 %v85
    %v306 = vunpack.c.l.b16 %v86
    %v307 = vunpack.c.l.b16 %v87
    %v308 = vunpack.c.l.b16 %v88
    %v309 = vunpack.c.l.b16 %v89
    %v310 = vunpack.c.l.b16 %v90
    %v311 = vunpack.c.l.b16 %v91
    %v312 = vunpack.c.l.b16 %v92
    %v313 = vunpack.c.l.b16 %v93
    %v314 = vunpack.c.l.b16 %v94
    %v315 = vunpack.c.l.b16 %v95
    %v316 = vunpack.c.l.b16 %v96
    %v317 = vunpack.c.l.b16 %v97
    %v318 = vunpack.c.l.b16 %v98
    %v319 = vunpack.c.l.b16 %v99
    %v320 = vunpack.c.l.b16 %v100
    %v321 = vunpack.c.l.b16 %v101
    %v322 = vunpack.c.l.b16 %v102
    %v323 = vunpack.c.l.b16 %v103
    %v324 = vunpack.c.l.b16 %v104
    %v325 = vunpack.c.l.b16 %v105
    %v326 = vunpack.c.l.b16 %v106
    %v327 = vunpack.c.l.b16 %v107
    %v328 = vunpack.c.l.b16 %v108
    %v329 = vunpack.c.l.b16 %v109
    %v330 = vunpack.c.l.b16 %v110
    %v331 = vunpack.c.l.b16 %v111
    %v332 = vunpack.c.l.b16 %v112
    %v333 = vunpack.c.l.b16 %v113
    %v334 = vunpack.c.l.b16 %v114
    %v335 = vunpack.c.l.b16 %v115
    %v336 = vunpack.c.l.b16 %v116
    %v337 = vunpack.c.l.b16 %v117
    %v338 = vunpack.c.l.b16 %v118
    %v339 = vunpack.c.l.b16 %v119
    %v340 = vunpack.c.l.b16 %v120
    %v341 = vunpack.c.l.b16 %v121
    %v342 = vunpack.c.l.b16 %v122
    %v343 = vunpack.c.l.b16 %v123
    %v344 = vunpack.c.l.b16 %v124
    %v345 = vunpack.c.l.b16 %v125
    %v346 = vunpack.c.l.b16 %v126
    %v347 = vunpack.c.l.b16 %v127
    %v348 = vunpack.c.l.b16 %v128
    %v349 = vunpack.c.l.b16 %v129
    %v350 = vunpack.c.l.b16 %v130
    %v351 = vunpack.c.l.b16 %v131
    %v352 = vunpack.c.l.b16 %v132
    %v353 = vunpack.c.l.b16 %v133
    %v354 = vunpack.c.l.b16 %v134
    %v355 = vunpack.c.l.b16 %v135
    %v356 = vunpack.c.l.b16 %v136
    %v357 = vunpack.c.l.b16 %v137
    %v358 = vunpack.c.l.b16 %v138
    %v359 = vunpack.c.l.b16 %v139
    %v360 = vunpack.c.l.b16 %v140
    %v361 = vunpack.c.l.b16 %v141
    %v362 = vunpack.c.l.b16 %v142
    %v363 = vunpack.c.l.b16 %v143
    %v364 = vunpack.c.l.b16 %v144
    %v365 = vunpack.c.l.b16 %v145
    %v366 = vunpack.c.l.b16 %v146
    %v367 = vunpack.c.l.b16 %v147
    %v368 = vunpack.c.l.b16 %v148
    %v369 = vunpack.c.l.b16 %v149
    %v370 = vunpack.c.l.b16 %v150
    %v371 = vunpack.c.l.b16 %v151
    %v372 = vunpack.c.l.b16 %v152
    %v373 = vunpack.c.l.b16 %v153
    %v374 = vpack.c.b16 %v279, %v278
    %v375 = vpack.c.b16 %v281, %v280
    %v376 = vpack.c.b16 %v283, %v282
    %v377 = vpack.c.b16 %v285, %v284
    %v378 = vpack.c.b16 %v287, %v286
    %v379 = vpack.c.b16 %v289, %v288
    %v380 = vpack.c.b16 %v291, %v290
    %v381 = vpack.c.b16 %v293, %v292
    %v382 = vpack.c.b16 %v295, %v294
    %v383 = vpack.c.b16 %v297, %v296
    %v384 = vpack.c.b16 %v299, %v298
    %v385 = vpack.c.b16 %v301, %v300
    %v386 = vpack.c.b16 %v303, %v302
    %v387 = vpack.c.b16 %v305, %v304
    %v388 = vpack.c.b16 %v307, %v306
    %v389 = vpack.c.b16 %v309, %v308
    %v390 = vpack.c.b16 %v311, %v310
    %v391 = vpack.c.b16 %v313, %v312
    %v392 = vpack.c.b16 %v315, %v314
    %v393 = vpack.c.b16 %v317, %v316
    %v394 = vpack.c.b16 %v319, %v318
    %v395 = vpack.c.b16 %v321, %v320
    %v396 = vpack.c.b16 %v323, %v322
    %v397 = vpack.c.b16 %v325, %v324
    %v398 = vpack.c.b16 %v327, %v326
    %v399 = vpack.c.b16 %v329, %v328
    %v400 = vpack.c.b16 %v331, %v330
    %v401 = vpack.c.b16 %v333, %v332
    %v402 = vpack.c.b16 %v335, %v334
    %v403 = vpack.c.b16 %v337, %v336
    %v404 = vpack.c.b16 %v339, %v338
    %v405 = vpack.c.b16 %v341, %v340
    %v406 = vpack.c.b16 %v343, %v342
    %v407 = vpack.c.b16 %v345, %v344
    %v408 = vpack.c.b16 %v347, %v346
    %v409 = vpack.c.b16 %v349, %v348
    %v410 = vpack.c.b16 %v351, %v350
    %v411 = vpack.c.b16 %v353, %v352
    %v412 = vpack.c.b16 %v355, %v354
    %v413 = vpack.c.b16 %v357, %v356
    %v414 = vpack.c.b16 %v359, %v358
    %v415 = vpack.c.b16 %v361, %v360
    %v416 = vpack.c.b16 %v363, %v362
    %v417 = vpack.c.b16 %v365, %v364
    %v418 = vpack.c.b16 %v367, %v366
    %v419 = vpack.c.b16 %v369, %v368
    %v420 = vpack.c.b16 %v371, %v370
    %v421 = vpack.c.b16 %v373, %v372
    %470 = vmatprep.subr.bf16.mxu0 0
    %471 = vmatpush1.bf16.msra.mxu0 %v374
    %472 = vmatprep.subr.bf16.mxu0 0
    %473 = vmatpush1.bf16.msra.mxu0 %v375
    %474 = vmatprep.subr.bf16.mxu0 0
    %475 = vmatpush1.bf16.msra.mxu0 %v376
    %476 = vmatprep.subr.bf16.mxu0 0
    %477 = vmatpush1.bf16.msra.mxu0 %v377
    %478 = vmatprep.subr.bf16.mxu0 0
    %479 = vmatpush1.bf16.msra.mxu0 %v378
    %480 = vmatprep.subr.bf16.mxu0 0
    %481 = vmatpush1.bf16.msra.mxu0 %v379
    %482 = vmatprep.subr.bf16.mxu0 0
    %483 = vmatpush1.bf16.msra.mxu0 %v380
    %484 = vmatprep.subr.bf16.mxu0 0
    %485 = vmatpush1.bf16.msra.mxu0 %v381
    %486 = vmatprep.subr.bf16.mxu0 0
    %487 = vmatpush1.bf16.msra.mxu0 %v382
    %488 = vmatprep.subr.bf16.mxu0 0
    %489 = vmatpush1.bf16.msra.mxu0 %v383
    %490 = vmatprep.subr.bf16.mxu0 0
    %491 = vmatpush1.bf16.msra.mxu0 %v384
    %492 = vmatprep.subr.bf16.mxu0 0
    %493 = vmatpush1.bf16.msra.mxu0 %v385
    %494 = vmatprep.subr.bf16.mxu0 0
    %495 = vmatpush1.bf16.msra.mxu0 %v386
    %496 = vmatprep.subr.bf16.mxu0 0
    %497 = vmatpush1.bf16.msra.mxu0 %v387
    %498 = vmatprep.subr.bf16.mxu0 0
    %499 = vmatpush1.bf16.msra.mxu0 %v388
    %500 = vmatprep.subr.bf16.mxu0 0
    %501 = vmatpush1.bf16.msra.mxu0 %v389
    %502 = vmatprep.mubr.bf16.mxu0 %v171
    %503 = vmatmul.mubr.bf16.gmra.mrb[0].mxu0 %v170
    %v504 = vpop.f32.mrb[0].mxu0
    %v505 = vadd.f32 %v159, %v504
    %v506 = vpop.f32.mrb[0].mxu0
    %v507 = vpop.f32.mrb[0].mxu0
    %v508 = vpop.f32.mrb[0].mxu0
    %509 = vdwg.mxu0
    %510 = vmatprep.subr.bf16.mxu0 0
    %511 = vmatpush1.bf16.msra.mxu0 %v390
    %512 = vmatprep.subr.bf16.mxu0 0
    %513 = vmatpush1.bf16.msra.mxu0 %v391
    %514 = vmatprep.subr.bf16.mxu0 0
    %515 = vmatpush1.bf16.msra.mxu0 %v392
    %516 = vmatprep.subr.bf16.mxu0 0
    %517 = vmatpush1.bf16.msra.mxu0 %v393
    %518 = vmatprep.subr.bf16.mxu0 0
    %519 = vmatpush1.bf16.msra.mxu0 %v394
    %520 = vmatprep.subr.bf16.mxu0 0
    %521 = vmatpush1.bf16.msra.mxu0 %v395
    %522 = vmatprep.subr.bf16.mxu0 0
    %523 = vmatpush1.bf16.msra.mxu0 %v396
    %524 = vmatprep.subr.bf16.mxu0 0
    %525 = vmatpush1.bf16.msra.mxu0 %v397
    %526 = vmatprep.subr.bf16.mxu0 0
    %527 = vmatpush1.bf16.msra.mxu0 %v398
    %528 = vmatprep.subr.bf16.mxu0 0
    %529 = vmatpush1.bf16.msra.mxu0 %v399
    %530 = vmatprep.subr.bf16.mxu0 0
    %531 = vmatpush1.bf16.msra.mxu0 %v400
    %532 = vmatprep.subr.bf16.mxu0 0
    %533 = vmatpush1.bf16.msra.mxu0 %v401
    %534 = vmatprep.subr.bf16.mxu0 0
    %535 = vmatpush1.bf16.msra.mxu0 %v402
    %536 = vmatprep.subr.bf16.mxu0 0
    %537 = vmatpush1.bf16.msra.mxu0 %v403
    %538 = vmatprep.subr.bf16.mxu0 0
    %539 = vmatpush1.bf16.msra.mxu0 %v404
    %540 = vmatprep.subr.bf16.mxu0 0
    %541 = vmatpush1.bf16.msra.mxu0 %v405
    %542 = vmatprep.mubr.bf16.mxu0 %v173
    %543 = vmatmul.mubr.bf16.gmra.mrb[0].mxu0 %v172
    %v544 = vpop.f32.mrb[0].mxu0
    %v545 = vadd.f32 %v505, %v544
    %v546 = vpop.f32.mrb[0].mxu0
    %v547 = vpop.f32.mrb[0].mxu0
    %v548 = vpop.f32.mrb[0].mxu0
    %549 = vdwg.mxu0
    %550 = vmatprep.subr.bf16.mxu0 0
    %551 = vmatpush1.bf16.msra.mxu0 %v406
    %552 = vmatprep.subr.bf16.mxu0 0
    %553 = vmatpush1.bf16.msra.mxu0 %v407
    %554 = vmatprep.subr.bf16.mxu0 0
    %555 = vmatpush1.bf16.msra.mxu0 %v408
    %556 = vmatprep.subr.bf16.mxu0 0
    %557 = vmatpush1.bf16.msra.mxu0 %v409
    %558 = vmatprep.subr.bf16.mxu0 0
    %559 = vmatpush1.bf16.msra.mxu0 %v410
    %560 = vmatprep.subr.bf16.mxu0 0
    %561 = vmatpush1.bf16.msra.mxu0 %v411
    %562 = vmatprep.subr.bf16.mxu0 0
    %563 = vmatpush1.bf16.msra.mxu0 %v412
    %564 = vmatprep.subr.bf16.mxu0 0
    %565 = vmatpush1.bf16.msra.mxu0 %v413
    %566 = vmatprep.subr.bf16.mxu0 0
    %567 = vmatpush1.bf16.msra.mxu0 %v414
    %568 = vmatprep.subr.bf16.mxu0 0
    %569 = vmatpush1.bf16.msra.mxu0 %v415
    %570 = vmatprep.subr.bf16.mxu0 0
    %571 = vmatpush1.bf16.msra.mxu0 %v416
    %572 = vmatprep.subr.bf16.mxu0 0
    %573 = vmatpush1.bf16.msra.mxu0 %v417
    %574 = vmatprep.subr.bf16.mxu0 0
    %575 = vmatpush1.bf16.msra.mxu0 %v418
    %576 = vmatprep.subr.bf16.mxu0 0
    %577 = vmatpush1.bf16.msra.mxu0 %v419
    %578 = vmatprep.subr.bf16.mxu0 0
    %579 = vmatpush1.bf16.msra.mxu0 %v420
    %580 = vmatprep.subr.bf16.mxu0 0
    %581 = vmatpush1.bf16.msra.mxu0 %v421
    %582 = vmatprep.mubr.bf16.mxu0 %v175
    %583 = vmatmul.mubr.bf16.gmra.mrb[0].mxu0 %v174
    %v584 = vpop.f32.mrb[0].mxu0
    %v585 = vadd.f32 %v545, %v584
    %v586 = vpop.f32.mrb[0].mxu0
    %v587 = vpop.f32.mrb[0].mxu0
    %v588 = vpop.f32.mrb[0].mxu0
    %589 = vdwg.mxu0
    %v590 = vmax.f32 %v585, 0.0
    %v591 = vpack.c.bf16 %v590, %v590
    %v592 = vld [vmem:[#allocation4] sm:$0xf]
    %v593 = vld [vmem:[#allocation4 + $0x4] sm:$0xf]
    %v594 = vld [vmem:[#allocation4 + $0x8] sm:$0xf]
    %v595 = vld [vmem:[#allocation4 + $0xc] sm:$0xf]
    %v596 = vld [vmem:[#allocation4 + $0x10] sm:$0xf]
    %v597 = vld [vmem:[#allocation4 + $0x14] sm:$0xf]
    %v598 = vld [vmem:[#allocation4 + $0x18] sm:$0xf]
    %v599 = vld [vmem:[#allocation4 + $0x1c] sm:$0xf]
    %v600 = vld [vmem:[#allocation4 + $0x20] sm:$0xf]
    %v601 = vld [vmem:[#allocation4 + $0x24] sm:$0xf]
    %v602 = vld [vmem:[#allocation4 + $0x28] sm:$0xf]
    %v603 = vld [vmem:[#allocation4 + $0x2c] sm:$0xf]
    %v604 = vld [vmem:[#allocation4 + $0x30] sm:$0xf]
    %v605 = vld [vmem:[#allocation4 + $0x34] sm:$0xf]
    %v606 = vld [vmem:[#allocation4 + $0x38] sm:$0xf]
    %v607 = vld [vmem:[#allocation4 + $0x3c] sm:$0xf]
    %v608 = vld [vmem:[%s4] sm:$0x1]
    %v610 = vlaneseq
    %v611 = vshrl.u32 %v610, 7
    %v612 = vsub.s32 0, %v611
    %v613 = vrot.slane %v608, %v612
    %v631 = vunpack.c.l.b16 %v592
    %v632 = vunpack.c.l.b16 %v593
    %v633 = vunpack.c.l.b16 %v594
    %v634 = vunpack.c.l.b16 %v595
    %v635 = vunpack.c.l.b16 %v596
    %v636 = vunpack.c.l.b16 %v597
    %v637 = vunpack.c.l.b16 %v598
    %v638 = vunpack.c.l.b16 %v599
    %v639 = vunpack.c.l.b16 %v600
    %v640 = vunpack.c.l.b16 %v601
    %v641 = vunpack.c.l.b16 %v602
    %v642 = vunpack.c.l.b16 %v603
    %v643 = vunpack.c.l.b16 %v604
    %v644 = vunpack.c.l.b16 %v605
    %v645 = vunpack.c.l.b16 %v606
    %v646 = vunpack.c.l.b16 %v607
    %v647 = vpack.c.b16 %v632, %v631
    %v648 = vpack.c.b16 %v634, %v633
    %v649 = vpack.c.b16 %v636, %v635
    %v650 = vpack.c.b16 %v638, %v637
    %v651 = vpack.c.b16 %v640, %v639
    %v652 = vpack.c.b16 %v642, %v641
    %v653 = vpack.c.b16 %v644, %v643
    %v654 = vpack.c.b16 %v646, %v645
    %663 = vmatprep.subr.bf16.mxu0 0
    %664 = vmatpush1.bf16.msra.mxu0 %v647
    %665 = vmatprep.subr.bf16.mxu0 0
    %666 = vmatpush1.bf16.msra.mxu0 %v648
    %667 = vmatprep.subr.bf16.mxu0 0
    %668 = vmatpush1.bf16.msra.mxu0 %v649
    %669 = vmatprep.subr.bf16.mxu0 0
    %670 = vmatpush1.bf16.msra.mxu0 %v650
    %671 = vmatprep.subr.bf16.mxu0 0
    %672 = vmatpush1.bf16.msra.mxu0 %v651
    %673 = vmatprep.subr.bf16.mxu0 0
    %674 = vmatpush1.bf16.msra.mxu0 %v652
    %675 = vmatprep.subr.bf16.mxu0 0
    %676 = vmatpush1.bf16.msra.mxu0 %v653
    %677 = vmatprep.subr.bf16.mxu0 0
    %678 = vmatpush1.bf16.msra.mxu0 %v654
    %679 = vmatprep.subr.bf16.mxu0 0
    %680 = vmatpush1.bf16.msra.mxu0 0
    %681 = vmatprep.subr.bf16.mxu0 0
    %682 = vmatpush1.bf16.msra.mxu0 0
    %683 = vmatprep.subr.bf16.mxu0 0
    %684 = vmatpush1.bf16.msra.mxu0 0
    %685 = vmatprep.subr.bf16.mxu0 0
    %686 = vmatpush1.bf16.msra.mxu0 0
    %687 = vmatprep.subr.bf16.mxu0 0
    %688 = vmatpush1.bf16.msra.mxu0 0
    %689 = vmatprep.subr.bf16.mxu0 0
    %690 = vmatpush1.bf16.msra.mxu0 0
    %691 = vmatprep.subr.bf16.mxu0 0
    %692 = vmatpush1.bf16.msra.mxu0 0
    %693 = vmatprep.subr.bf16.mxu0 0
    %694 = vmatpush1.bf16.msra.mxu0 0
    %695 = vmatprep.mubr.bf16.mxu0 0
    %696 = vmatmul.mubr.bf16.gmra.mrb[0].mxu0 %v591
    %v697 = vpop.f32.mrb[0].mxu0
    %v698 = vadd.f32 %v613, %v697
    %v699 = vpop.f32.mrb[0].mxu0
    %v700 = vpop.f32.mrb[0].mxu0
    %v701 = vpop.f32.mrb[0].mxu0
    %702 = vdwg.mxu0
    %v703 = vmax.f32 %v698, 0.0
    %v704 = vpack.c.bf16 %v703, %v703
    %v705 = vld [vmem:[%s5] sm:$0xf]
    %v706 = vld [vmem:[%s5 + $0x4] sm:$0xf]
    %v707 = vld [vmem:[%s5 + $0x8] sm:$0xf]
    %v708 = vld [vmem:[%s5 + $0xc] sm:$0xf]
    %v709 = vld [vmem:[%s5 + $0x10] sm:$0xf]
    %v710 = vld [vmem:[%s5 + $0x14] sm:$0xf]
    %v711 = vld [vmem:[%s5 + $0x18] sm:$0xf]
    %v712 = vld [vmem:[%s5 + $0x1c] sm:$0xf]
    %v713 = vld [vmem:[%s5 + $0x20] sm:$0xf]
    %v714 = vld [vmem:[%s5 + $0x24] sm:$0xf]
    %v715 = vld [vmem:[%s5 + $0x28] sm:$0xf]
    %v716 = vld [vmem:[%s5 + $0x2c] sm:$0xf]
    %v717 = vld [vmem:[%s5 + $0x30] sm:$0xf]
    %v718 = vld [vmem:[%s5 + $0x34] sm:$0xf]
    %v719 = vld [vmem:[%s5 + $0x38] sm:$0xf]
    %v720 = vld [vmem:[%s5 + $0x3c] sm:$0xf]
    %v721 = vld [vmem:[%s6] sm:$0x1]
    %v723 = vlaneseq
    %v724 = vshrl.u32 %v723, 7
    %v725 = vsub.s32 0, %v724
    %v726 = vrot.slane %v721, %v725
    %v744 = vunpack.c.l.b16 %v705
    %v745 = vunpack.c.l.b16 %v706
    %v746 = vunpack.c.l.b16 %v707
    %v747 = vunpack.c.l.b16 %v708
    %v748 = vunpack.c.l.b16 %v709
    %v749 = vunpack.c.l.b16 %v710
    %v750 = vunpack.c.l.b16 %v711
    %v751 = vunpack.c.l.b16 %v712
    %v752 = vunpack.c.l.b16 %v713
    %v753 = vunpack.c.l.b16 %v714
    %v754 = vunpack.c.l.b16 %v715
    %v755 = vunpack.c.l.b16 %v716
    %v756 = vunpack.c.l.b16 %v717
    %v757 = vunpack.c.l.b16 %v718
    %v758 = vunpack.c.l.b16 %v719
    %v759 = vunpack.c.l.b16 %v720
    %v760 = vpack.c.b16 %v745, %v744
    %v761 = vpack.c.b16 %v747, %v746
    %v762 = vpack.c.b16 %v749, %v748
    %v763 = vpack.c.b16 %v751, %v750
    %v764 = vpack.c.b16 %v753, %v752
    %v765 = vpack.c.b16 %v755, %v754
    %v766 = vpack.c.b16 %v757, %v756
    %v767 = vpack.c.b16 %v759, %v758
    %776 = vmatprep.subr.bf16.mxu0 0
    %777 = vmatpush1.bf16.msra.mxu0 %v760
    %778 = vmatprep.subr.bf16.mxu0 0
    %779 = vmatpush1.bf16.msra.mxu0 %v761
    %780 = vmatprep.subr.bf16.mxu0 0
    %781 = vmatpush1.bf16.msra.mxu0 %v762
    %782 = vmatprep.subr.bf16.mxu0 0
    %783 = vmatpush1.bf16.msra.mxu0 %v763
    %784 = vmatprep.subr.bf16.mxu0 0
    %785 = vmatpush1.bf16.msra.mxu0 %v764
    %786 = vmatprep.subr.bf16.mxu0 0
    %787 = vmatpush1.bf16.msra.mxu0 %v765
    %788 = vmatprep.subr.bf16.mxu0 0
    %789 = vmatpush1.bf16.msra.mxu0 %v766
    %790 = vmatprep.subr.bf16.mxu0 0
    %791 = vmatpush1.bf16.msra.mxu0 %v767
    %792 = vmatprep.subr.bf16.mxu0 0
    %793 = vmatpush1.bf16.msra.mxu0 0
    %794 = vmatprep.subr.bf16.mxu0 0
    %795 = vmatpush1.bf16.msra.mxu0 0
    %796 = vmatprep.subr.bf16.mxu0 0
    %797 = vmatpush1.bf16.msra.mxu0 0
    %798 = vmatprep.subr.bf16.mxu0 0
    %799 = vmatpush1.bf16.msra.mxu0 0
    %800 = vmatprep.subr.bf16.mxu0 0
    %801 = vmatpush1.bf16.msra.mxu0 0
    %802 = vmatprep.subr.bf16.mxu0 0
    %803 = vmatpush1.bf16.msra.mxu0 0
    %804 = vmatprep.subr.bf16.mxu0 0
    %805 = vmatpush1.bf16.msra.mxu0 0
    %806 = vmatprep.subr.bf16.mxu0 0
    %807 = vmatpush1.bf16.msra.mxu0 0
    %808 = vmatprep.mubr.bf16.mxu0 0
    %809 = vmatmul.mubr.bf16.gmra.mrb[0].mxu0 %v704
    %v810 = vpop.f32.mrb[0].mxu0
    %v811 = vadd.f32 %v726, %v810
    %v812 = vpop.f32.mrb[0].mxu0
    %v813 = vpop.f32.mrb[0].mxu0
    %v814 = vpop.f32.mrb[0].mxu0
    %815 = vdwg.mxu0
    %816 = vst [vmem:[%s7] sm:$0xff] %v811
    // Predicated region
    $region38: #{predictor_forward.1} parent=1 // pred_check
      _
    $region39: #{predictor_forward.1} parent=1 // pred_check_branch
      %818 = sbr.rel (0) target = $region41
    $region40: #{predictor_forward.1} parent=1 // pred_region
      _
    $region41: #{predictor_forward.1} parent=1 // pred_fallthru
      _
    // Predicated region
    $region42: #{predictor_forward.1} parent=1 // pred_check
      _
    $region43: #{predictor_forward.1} parent=1 // pred_check_branch
      %820 = sbr.rel (0) target = $region45
    $region44: #{predictor_forward.1} parent=1 // pred_region
      _
    $region45: #{predictor_forward.1} parent=1 // pred_fallthru
      _
    %821 = vsyncpa [#allocation3], 1
    %822 = vsyncpa [#allocation5], 1

</llo_original>
